<compile_context>
chip_gen: v6e
topology: v6e:2x2x1
jax: 0.10.0
libtpu: 0.0.40
codegen_flags: <defaults>
</compile_context>

<pallas_src>
import jax
import jax.numpy as jnp
import numpy as np
from jax.experimental import pallas as pl
from jax.experimental.pallas import tpu as pltpu

NEG_SLOPE = 0.01  # torch.nn.LeakyReLU default


def _leaky_relu(x):
    return jnp.where(x > 0, x, NEG_SLOPE * x)


def _elu(x):
    return jnp.where(x > 0, x, jnp.expm1(x))


def _round_up(x, m):
    return ((x + m - 1) // m) * m


def _pad2(x, rows, cols, value=0.0):
    r, c = x.shape
    return jnp.pad(x, ((0, rows - r), (0, cols - c)), constant_values=value)


# ---------------------------------------------------------------------------
# Kernel 1: edge-parallel projections (linear_e + linear + attention fused).
# ---------------------------------------------------------------------------
def edge_kernel(x_ref, wbig_ref, bbig_ref, wm_ref, newe_ref, fused_ref):
    ed_pad = newe_ref.shape[1]
    x = x_ref[...]                                            # [TE, in_dim]
    big = (jnp.dot(x, wbig_ref[...], preferred_element_type=jnp.float32)
           + bbig_ref[...])                                   # [TE, ed_pad+c_pad]
    new_e = _leaky_relu(big[:, :ed_pad])                      # [TE, ed_pad]
    newe_ref[...] = new_e.astype(newe_ref.dtype)
    # second concat replaces e -> new_e: add new_e's contribution explicitly
    pre = big[:, ed_pad:] + jnp.dot(new_e, wm_ref[...],
                                    preferred_element_type=jnp.float32)
    fused_ref[...] = _leaky_relu(pre).astype(fused_ref.dtype)  # [TE, c_pad]


# ---------------------------------------------------------------------------
# Kernel 2: node-parallel masked-softmax aggregation.
#   nem @ diag(a)  ==  nem * a[None, :]   (broadcast column scale, no MXU)
# ---------------------------------------------------------------------------
def agg_kernel(nem_ref, mask_ref, a_ref, nb_ref, ctx_ref):
    w = nem_ref[...] * a_ref[...] + mask_ref[...]             # [TN, E_pad]
    w = w - jnp.max(w, axis=1, keepdims=True)
    ew = jnp.exp(w)
    sm = ew * pl.reciprocal(jnp.sum(ew, axis=1, keepdims=True), approx=False)
    ctx = jnp.dot(sm, nb_ref[...], preferred_element_type=jnp.float32)
    ctx_ref[...] = _elu(ctx).astype(ctx_ref.dtype)            # [TN, c_pad]


def pos_concat_mes_passing(u, e, p, v, nem, mask, params,
                           *, edge_tile=512, node_tile=128):
    E, n = u.shape
    ed = e.shape[1]
    pd = p.shape[1]
    c = params["W"].shape[0]
    N = nem.shape[0]
    in_dim = 2 * n + ed + pd

    # lane-dense (multiple-of-128) padded feature dims for kernel outputs
    ed_pad = _round_up(ed, 128)
    c_pad = _round_up(c + 1, 128)            # +1: fused attention column

    TE = min(edge_tile, _round_up(E, 8))
    E_pad = _round_up(E, TE)
    TN = min(node_tile, _round_up(N, 8))
    N_pad = _round_up(N, TN)

    # ---- pack inputs (single concatenated slab -> one K=in_dim matmul) ----
    x_cat = _pad2(jnp.concatenate([u, e, p, v], axis=1), E_pad, in_dim)

    nem_p = _pad2(nem, N_pad, E_pad)
    # padded edge columns must be excluded from the softmax
    mask_p = jnp.pad(mask, ((0, 0), (0, E_pad - E)), constant_values=-1e9)
    mask_p = jnp.pad(mask_p, ((0, N_pad - N), (0, 0)), constant_values=0.0)

    # ---- pack weights: fuse attention into the neighbor projection ----
    W, b = params["W"], params["b"]          # [c, in_dim], [c]
    We, be = params["We"], params["be"]      # [ed, in_dim], [ed]
    Wa, ba = params["Wa"], params["ba"]      # [1, in_dim], [1]

    Wf = jnp.concatenate([W, Wa], axis=0)    # [c+1, in_dim]
    bf = jnp.concatenate([b, ba], axis=0)    # [c+1]

    WfT = Wf.T                               # [in_dim, c+1]
    WmT = WfT[n:n + ed, :]                   # rows multiplying the edge slice
    WfT_z = WfT.at[n:n + ed, :].set(0.0)     # e-rows zeroed (replaced by new_e)

    wbig = jnp.concatenate([_pad2(We.T, in_dim, ed_pad),
                            _pad2(WfT_z, in_dim, c_pad)], axis=1)
    bbig = jnp.concatenate([jnp.pad(be, (0, ed_pad - ed)),
                            jnp.pad(bf, (0, c_pad - (c + 1)))]).reshape(1, -1)
    wm = _pad2(WmT, ed_pad, c_pad)

    # ---- kernel 1: edge-parallel projections ----
    # (tiles stay well inside default scoped VMEM; raise vmem_limit_bytes via
    #  pltpu.CompilerParams if edge_tile is increased on v6e.)
    newe_p, fused = pl.pallas_call(
        edge_kernel,
        out_shape=(jax.ShapeDtypeStruct((E_pad, ed_pad), jnp.float32),
                   jax.ShapeDtypeStruct((E_pad, c_pad), jnp.float32)),
        grid=(E_pad // TE,),
        in_specs=[
            pl.BlockSpec((TE, in_dim), lambda i: (i, 0)),
            pl.BlockSpec((in_dim, ed_pad + c_pad), lambda i: (0, 0)),
            pl.BlockSpec((1, ed_pad + c_pad), lambda i: (0, 0)),
            pl.BlockSpec((ed_pad, c_pad), lambda i: (0, 0)),
        ],
        out_specs=(pl.BlockSpec((TE, ed_pad), lambda i: (i, 0)),
                   pl.BlockSpec((TE, c_pad), lambda i: (i, 0))),
        compiler_params=pltpu.CompilerParams(
            dimension_semantics=("parallel",)),
    )(x_cat, wbig, bbig, wm)

    # attention logits as a lane-major row vector (layout plumbing only)
    a_row = fused[:, c].reshape(1, E_pad)

    # ---- kernel 2: node-parallel softmax aggregation ----
    ctx_p = pl.pallas_call(
        agg_kernel,
        out_shape=jax.ShapeDtypeStruct((N_pad, c_pad), jnp.float32),
        grid=(N_pad // TN,),
        in_specs=[
            pl.BlockSpec((TN, E_pad), lambda i: (i, 0)),
            pl.BlockSpec((TN, E_pad), lambda i: (i, 0)),
            pl.BlockSpec((1, E_pad), lambda i: (0, 0)),
            pl.BlockSpec((E_pad, c_pad), lambda i: (0, 0)),
        ],
        out_specs=pl.BlockSpec((TN, c_pad), lambda i: (i, 0)),
        compiler_params=pltpu.CompilerParams(
            dimension_semantics=("parallel",)),
    )(nem_p, mask_p, a_row, fused)

    ctx = ctx_p[:N, :c]
    new_e = newe_p[:E, :ed]
    return ctx, new_e


# ---------------------------------------------------------------------------
# Pure-JAX reference (literal translation of the PyTorch module, p=0 dropout).
# ---------------------------------------------------------------------------
def reference(u, e, p, v, nem, mask, prm):
    x1 = jnp.concatenate([u, e, p, v], axis=1)
    new_e = _leaky_relu(x1 @ prm["We"].T + prm["be"])
    x2 = jnp.concatenate([u, new_e, p, v], axis=1)
    neigh = _leaky_relu(x2 @ prm["W"].T + prm["b"])
    a = _leaky_relu(x2 @ prm["Wa"].T + prm["ba"])        # [E, 1]
    d = jnp.diag(a[:, 0])
    w = jax.nn.softmax(nem @ d + mask, axis=1)
    ctx = jax.nn.elu(w @ neigh)
    return ctx, new_e


def _linear_init(key, out_dim, in_dim):
    kw, kb = jax.random.split(key)
    bound = 1.0 / np.sqrt(in_dim)
    Wm = jax.random.uniform(kw, (out_dim, in_dim), jnp.float32, -bound, bound)
    bm = jax.random.uniform(kb, (out_dim,), jnp.float32, -bound, bound)
    return Wm, bm


if __name__ == "__main__":
    n_dim, e_dim, p_dim, c_dim = 8, 8, 4, 16
    E, N = 16, 8                                  # edges, nodes
    in_dim = 2 * n_dim + e_dim + p_dim

    key = jax.random.PRNGKey(0)
    ks = jax.random.split(key, 9)

    W, b = _linear_init(ks[0], c_dim, in_dim)       # self.linear
    We, be = _linear_init(ks[1], e_dim, in_dim)     # self.linear_e
    Wa, ba = _linear_init(ks[2], 1, in_dim)         # self.attention
    params = {"W": W, "b": b, "We": We, "be": be, "Wa": Wa, "ba": ba}

    u = jax.random.normal(ks[3], (E, n_dim), jnp.float32)
    v = jax.random.normal(ks[4], (E, n_dim), jnp.float32)
    e = jax.random.normal(ks[5], (E, e_dim), jnp.float32)
    pos = jax.random.normal(ks[6], (E, p_dim), jnp.float32)
    nem = (jax.random.uniform(ks[7], (N, E)) < 0.4).astype(jnp.float32)
    mask = jnp.where(nem > 0, 0.0, -1e9).astype(jnp.float32)

    ctx, new_e = pos_concat_mes_passing(u, e, pos, v, nem, mask, params)
    jax.block_until_ready((ctx, new_e))

    ctx_ref, new_e_ref = reference(u, e, pos, v, nem, mask, params)
    np.testing.assert_allclose(np.asarray(new_e), np.asarray(new_e_ref),
                               rtol=1e-5, atol=1e-5)
    np.testing.assert_allclose(np.asarray(ctx), np.asarray(ctx_ref),
                               rtol=1e-5, atol=1e-5)
    print("KERNEL_OK")
</pallas_src>

<mosaic_0001>
module attributes {stable_mosaic.version = 11 : i64} {
  func.func @edge_kernel(%arg0: i32, %arg1: memref<16x28xf32, #tpu.memory_space<vmem>>, %arg2: memref<28x256xf32, #tpu.memory_space<vmem>>, %arg3: memref<1x256xf32, #tpu.memory_space<vmem>>, %arg4: memref<128x128xf32, #tpu.memory_space<vmem>>, %arg5: memref<16x128xf32, #tpu.memory_space<vmem>>, %arg6: memref<16x128xf32, #tpu.memory_space<vmem>>) attributes {dimension_semantics = [#tpu.dimension_semantics<parallel>], iteration_bounds = array<i64: 1>, scalar_prefetch = 0 : i64, scratch_operands = 0 : i64, tpu.core_type = #tpu.core_type<tc>, window_params = [{transform_indices = @transform_0, window_bounds = array<i64: 16, 28>}, {pipeline_mode = #tpu.pipeline_mode<synchronous>, transform_indices = @transform_1, window_bounds = array<i64: 28, 256>}, {pipeline_mode = #tpu.pipeline_mode<synchronous>, transform_indices = @transform_2, window_bounds = array<i64: 1, 256>}, {pipeline_mode = #tpu.pipeline_mode<synchronous>, transform_indices = @transform_3, window_bounds = array<i64: 128, 128>}, {transform_indices = @transform_4, window_bounds = array<i64: 16, 128>}, {transform_indices = @transform_5, window_bounds = array<i64: 16, 128>}]} {
    %c0 = arith.constant 0 : index
    %c0_0 = arith.constant 0 : index
    %0 = vector.load %arg1[%c0, %c0_0] : memref<16x28xf32, #tpu.memory_space<vmem>>, vector<16x28xf32>
    %c0_1 = arith.constant 0 : index
    %c0_2 = arith.constant 0 : index
    %1 = vector.load %arg2[%c0_1, %c0_2] : memref<28x256xf32, #tpu.memory_space<vmem>>, vector<28x256xf32>
    %cst = arith.constant dense<0.000000e+00> : vector<16x256xf32>
    %2 = tpu.matmul %0, %1, %cst {dimension_numbers = #tpu.dot_dimension_numbers<[1], [0], [0], [1], [0, 0, 1, 1], [], []>} : vector<16x28xf32>, vector<28x256xf32>, vector<16x256xf32> -> vector<16x256xf32>
    %c0_3 = arith.constant 0 : index
    %c0_4 = arith.constant 0 : index
    %3 = vector.load %arg3[%c0_3, %c0_4] : memref<1x256xf32, #tpu.memory_space<vmem>>, vector<1x256xf32>
    %4 = vector.broadcast %3 : vector<1x256xf32> to vector<16x256xf32>
    %5 = arith.addf %2, %4 : vector<16x256xf32>
    %6 = vector.extract_strided_slice %5 {offsets = [0, 0], sizes = [16, 128], strides = [1, 1]} : vector<16x256xf32> to vector<16x128xf32>
    %cst_5 = arith.constant 0.000000e+00 : f32
    %7 = vector.broadcast %cst_5 : f32 to vector<16x128xf32>
    %8 = arith.cmpf ogt, %6, %7 : vector<16x128xf32>
    %cst_6 = arith.constant 0.00999999977 : f32
    %9 = vector.broadcast %cst_6 : f32 to vector<16x128xf32>
    %10 = arith.mulf %9, %6 : vector<16x128xf32>
    %11 = arith.select %8, %6, %10 : vector<16x128xi1>, vector<16x128xf32>
    %c0_7 = arith.constant 0 : index
    %c0_8 = arith.constant 0 : index
    %12 = vector.load %arg5[%c0_7, %c0_8] : memref<16x128xf32, #tpu.memory_space<vmem>>, vector<16x128xf32>
    tpu.vector_store %arg5[%c0_7, %c0_8], %11 {strides = array<i32>} : memref<16x128xf32, #tpu.memory_space<vmem>>, vector<16x128xf32>,
    %13 = vector.extract_strided_slice %5 {offsets = [0, 128], sizes = [16, 128], strides = [1, 1]} : vector<16x256xf32> to vector<16x128xf32>
    %c0_9 = arith.constant 0 : index
    %c0_10 = arith.constant 0 : index
    %14 = vector.load %arg4[%c0_9, %c0_10] : memref<128x128xf32, #tpu.memory_space<vmem>>, vector<128x128xf32>
    %cst_11 = arith.constant dense<0.000000e+00> : vector<16x128xf32>
    %15 = tpu.matmul %11, %14, %cst_11 {dimension_numbers = #tpu.dot_dimension_numbers<[1], [0], [0], [1], [0, 0, 1, 1], [], []>} : vector<16x128xf32>, vector<128x128xf32>, vector<16x128xf32> -> vector<16x128xf32>
    %16 = arith.addf %13, %15 : vector<16x128xf32>
    %cst_12 = arith.constant 0.000000e+00 : f32
    %17 = vector.broadcast %cst_12 : f32 to vector<16x128xf32>
    %18 = arith.cmpf ogt, %16, %17 : vector<16x128xf32>
    %cst_13 = arith.constant 0.00999999977 : f32
    %19 = vector.broadcast %cst_13 : f32 to vector<16x128xf32>
    %20 = arith.mulf %19, %16 : vector<16x128xf32>
    %21 = arith.select %18, %16, %20 : vector<16x128xi1>, vector<16x128xf32>
    %c0_14 = arith.constant 0 : index
    %c0_15 = arith.constant 0 : index
    %22 = vector.load %arg6[%c0_14, %c0_15] : memref<16x128xf32, #tpu.memory_space<vmem>>, vector<16x128xf32>
    tpu.vector_store %arg6[%c0_14, %c0_15], %21 {strides = array<i32>} : memref<16x128xf32, #tpu.memory_space<vmem>>, vector<16x128xf32>,
    return
  }
  func.func @transform_0(%arg0: i32) -> (i32, i32) {
    %c0_i32 = arith.constant 0 : i32
    %c0_i32_0 = arith.constant 0 : i32
    return %arg0, %c0_i32 : i32, i32
  }
  func.func @transform_1(%arg0: i32) -> (i32, i32) {
    %c0_i32 = arith.constant 0 : i32
    %c0_i32_0 = arith.constant 0 : i32
    %c0_i32_1 = arith.constant 0 : i32
    return %c0_i32, %c0_i32_0 : i32, i32
  }
  func.func @transform_2(%arg0: i32) -> (i32, i32) {
    %c0_i32 = arith.constant 0 : i32
    %c0_i32_0 = arith.constant 0 : i32
    %c0_i32_1 = arith.constant 0 : i32
    return %c0_i32, %c0_i32_0 : i32, i32
  }
  func.func @transform_3(%arg0: i32) -> (i32, i32) {
    %c0_i32 = arith.constant 0 : i32
    %c0_i32_0 = arith.constant 0 : i32
    %c0_i32_1 = arith.constant 0 : i32
    return %c0_i32, %c0_i32_0 : i32, i32
  }
  func.func @transform_4(%arg0: i32) -> (i32, i32) {
    %c0_i32 = arith.constant 0 : i32
    %c0_i32_0 = arith.constant 0 : i32
    return %arg0, %c0_i32 : i32, i32
  }
  func.func @transform_5(%arg0: i32) -> (i32, i32) {
    %c0_i32 = arith.constant 0 : i32
    %c0_i32_0 = arith.constant 0 : i32
    return %arg0, %c0_i32 : i32, i32
  }
}

</mosaic_0001>

<llo_original>
// kernel: tpu_custom_call.1
$region0: #{tpu_custom_call.1}
  #allocation0 [shape = 'u32[]', space=smem, size = 0x4, offset = 0x4, fixed_abs, tag = 'smem constant byte address 0x4 - core index']
  #allocation1 [shape = 'u32[144,128]{1,0:T(1,128)}', space=vmem, size = 0x12000, scoped, tag = 'internal scratch']
  %s0 = inlined_call_operand.hbm [shape: f32[16,28], index: 0, kind: input, shape index: {}]
  %s1 = inlined_call_operand.hbm [shape: f32[28,256], index: 1, kind: input, shape index: {}]
  %s2 = inlined_call_operand.vmem [shape: f32[1,256], index: 2, kind: input, shape index: {}]
  %s3 = inlined_call_operand.hbm [shape: f32[128,128], index: 3, kind: input, shape index: {}]
  %s4 = inlined_call_operand.hbm [shape: f32[16,128], index: 4, kind: output, shape index: {0}]
  %s5 = inlined_call_operand.hbm [shape: f32[16,128], index: 5, kind: output, shape index: {1}]
  %6 = xla_tuple %s4, %s5
  %s7 = sld [smem:[#allocation0]]
  $region46: #{tpu_custom_call.1} parent=0
    _
  %s9 = ssub.s32 1, %s7
  %s10 = scalar_select 0, %s9, %s7
  $region1: #{tpu_custom_call.1} parent=0
    #allocation2 [shape = 'u8[8192]{0}', space=vmem, size = 0x2000, scoped, tag = 'input window, operand 0, single buffered']
    #allocation3 [shape = 's32[1]{0}', space=sflag, size = 0x4, scoped, tag = 'scoped memory for tpu_custom_call.1']
    #allocation4 [shape = 's32[1]{0}', space=sflag, size = 0x4, scoped, tag = 'scoped memory for tpu_custom_call.1']
    #allocation5 [shape = 'u8[32768]{0}', space=vmem, size = 0x8000, scoped, tag = 'input window, operand 1, single buffered']
    #allocation6 [shape = 's32[1]{0}', space=sflag, size = 0x4, scoped, tag = 'scoped memory for tpu_custom_call.1']
    #allocation7 [shape = 'u8[65536]{0}', space=vmem, size = 0x10000, scoped, tag = 'input window, operand 3, single buffered']
    #allocation8 [shape = 'u8[8192]{0}', space=vmem, size = 0x2000, scoped, tag = 'output window, operand 0, single buffered']
    #allocation9 [shape = 'u8[8192]{0}', space=vmem, size = 0x2000, scoped, tag = 'output window, operand 1, single buffered']
    #allocation10 [shape = 's32[1]{0}', space=sflag, size = 0x4, scoped, tag = 'scoped memory for tpu_custom_call.1']
    %11 = vsyncpa [#allocation3], 0
    %12 = vsyncpa [#allocation6], 0
    %13 = vsyncpa [#allocation4], 0
    %14 = vsyncpa [#allocation10], 0
    // Predicated region
    $region2: #{tpu_custom_call.1} parent=1 // pred_check
      _
    $region3: #{tpu_custom_call.1} parent=1 // pred_check_branch
      %16 = sbr.rel (0) target = $region5
    $region4: #{tpu_custom_call.1} parent=1 // pred_region
      %s18 = ssub.s32 256, 256
      %19 = vsyncadd [#allocation3], %s18
      %s20 = sshll.u32 [#allocation2], 4
      %s21 = int_to_ptr.vmem [resolvable:$true] %s20
      %26 = dma.hbm_to_vmem [thread:$0]  %s0, 256, %s21, [#allocation3], 128, 128, 8
    $region5: #{tpu_custom_call.1} parent=1 // pred_fallthru
      _
    // Predicated region
    $region6: #{tpu_custom_call.1} parent=1 // pred_check
      _
    $region7: #{tpu_custom_call.1} parent=1 // pred_check_branch
      %28 = sbr.rel (0) target = $region9
    $region8: #{tpu_custom_call.1} parent=1 // pred_region
      %s30 = ssub.s32 1024, 1024
      %31 = vsyncadd [#allocation6], %s30
      %s32 = sshll.u32 [#allocation5], 4
      %s33 = int_to_ptr.vmem [resolvable:$true] %s32
      %38 = dma.hbm_to_vmem [thread:$0]  %s1, 1024, %s33, [#allocation6], 256, 256, 16
    $region9: #{tpu_custom_call.1} parent=1 // pred_fallthru
      _
    // Predicated region
    $region10: #{tpu_custom_call.1} parent=1 // pred_check
      _
    $region11: #{tpu_custom_call.1} parent=1 // pred_check_branch
      %40 = sbr.rel (0) target = $region13
    $region12: #{tpu_custom_call.1} parent=1 // pred_region
      _
    $region13: #{tpu_custom_call.1} parent=1 // pred_fallthru
      _
    // Predicated region
    $region14: #{tpu_custom_call.1} parent=1 // pred_check
      _
    $region15: #{tpu_custom_call.1} parent=1 // pred_check_branch
      %42 = sbr.rel (0) target = $region17
    $region16: #{tpu_custom_call.1} parent=1 // pred_region
      %s44 = ssub.s32 2048, 2048
      %45 = vsyncadd [#allocation6], %s44
      %s46 = sshll.u32 [#allocation7], 4
      %s47 = int_to_ptr.vmem [resolvable:$true] %s46
      %52 = dma.hbm_to_vmem [thread:$0]  %s3, 2048, %s47, [#allocation6], 128, 128, 8
    $region17: #{tpu_custom_call.1} parent=1 // pred_fallthru
      _
    // Predicated region
    $region18: #{tpu_custom_call.1} parent=1 // pred_check
      _
    $region19: #{tpu_custom_call.1} parent=1 // pred_check_branch
      %54 = sbr.rel (0) target = $region21
    $region20: #{tpu_custom_call.1} parent=1 // pred_region
      %55 = dma.done [#allocation3], 256
    $region21: #{tpu_custom_call.1} parent=1 // pred_fallthru
      _
    // Predicated region
    $region22: #{tpu_custom_call.1} parent=1 // pred_check
      _
    $region23: #{tpu_custom_call.1} parent=1 // pred_check_branch
      %57 = sbr.rel (0) target = $region25
    $region24: #{tpu_custom_call.1} parent=1 // pred_region
      %58 = dma.done [#allocation6], 1024
    $region25: #{tpu_custom_call.1} parent=1 // pred_fallthru
      _
    // Predicated region
    $region26: #{tpu_custom_call.1} parent=1 // pred_check
      _
    $region27: #{tpu_custom_call.1} parent=1 // pred_check_branch
      %60 = sbr.rel (0) target = $region29
    $region28: #{tpu_custom_call.1} parent=1 // pred_region
      %61 = dma.done [#allocation6], 2048
    $region29: #{tpu_custom_call.1} parent=1 // pred_fallthru
      _
    %v62 = vld [vmem:[#allocation2] sm:$0xff]
    %v63 = vld [vmem:[#allocation2 + $0x8] sm:$0xff]
    %v64 = vld [vmem:[#allocation5] sm:$0xff]
    %v65 = vld [vmem:[#allocation5 + $0x8] sm:$0xff]
    %v66 = vld [vmem:[#allocation5 + $0x10] sm:$0xff]
    %v67 = vld [vmem:[#allocation5 + $0x18] sm:$0xff]
    %v68 = vld [vmem:[#allocation5 + $0x20] sm:$0xff]
    %v69 = vld [vmem:[#allocation5 + $0x28] sm:$0xff]
    %v70 = vld [vmem:[#allocation5 + $0x30] sm:$0xf]
    %v71 = vld [vmem:[#allocation5 + $0x38] sm:$0xf]
    %v72 = vld [vmem:[%s2] sm:$0x3]
    %v74 = vlaneseq
    %v75 = vshrl.u32 %v74, 7
    %v76 = vsub.s32 0, %v75
    %v77 = vrot.slane %v72, %v76
    %v78 = vlaneseq
    %v79 = vshrl.u32 %v78, 7
    %v80 = vsub.s32 1, %v79
    %v81 = vrot.slane %v72, %v80
    %vm84 = vcmask 228352
    %v86 = vsel %vm84, %v62, 0
    %v89 = vsel %vm84, %v63, 0
    %vm91 = vcmask 1043456
    %v93 = vsel %vm91, %v70, 0
    %v96 = vsel %vm91, %v71, 0
    %98 = vmatprep.subr.mxu0 0.0
    %99 = vmatpush1.msra.mxu0 0.0
    %100 = vmatprep.subr.mxu0 0.0
    %101 = vmatpush1.msra.mxu0 0.0
    %102 = vmatprep.subr.mxu0 0.0
    %103 = vmatpush1.msra.mxu0 0.0
    %104 = vmatprep.subr.mxu0 0.0
    %105 = vmatpush1.msra.mxu0 0.0
    %106 = vmatprep.subr.mxu0 0.0
    %107 = vmatpush1.msra.mxu0 0.0
    %108 = vmatprep.subr.mxu0 0.0
    %109 = vmatpush1.msra.mxu0 0.0
    %110 = vmatprep.subr.mxu0 0.0
    %111 = vmatpush1.msra.mxu0 0.0
    %112 = vmatprep.subr.mxu0 0.0
    %113 = vmatpush1.msra.mxu0 0.0
    %114 = vmatprep.subr.mxu0 0.0
    %115 = vmatpush1.msra.mxu0 0.0
    %116 = vmatprep.subr.mxu0 0.0
    %117 = vmatpush1.msra.mxu0 0.0
    %118 = vmatprep.subr.mxu0 0.0
    %119 = vmatpush1.msra.mxu0 0.0
    %120 = vmatprep.subr.mxu0 0.0
    %121 = vmatpush1.msra.mxu0 0.0
    %122 = vmatprep.subr.mxu0 %v96
    %123 = vmatpush1.msra.mxu0 %v93
    %124 = vmatprep.subr.mxu0 %v69
    %125 = vmatpush1.msra.mxu0 %v68
    %126 = vmatprep.subr.mxu0 %v67
    %127 = vmatpush1.msra.mxu0 %v66
    %128 = vmatprep.subr.mxu0 %v65
    %129 = vmatpush1.msra.mxu0 %v64
    %130 = vmatprep.subr.mxu0 0.0
    %131 = vmatpush2.msra.mxu0 0.0
    %132 = vmatprep.subr.mxu0 0.0
    %133 = vmatpush2.msra.mxu0 0.0
    %134 = vmatprep.subr.mxu0 0.0
    %135 = vmatpush2.msra.mxu0 0.0
    %136 = vmatprep.subr.mxu0 0.0
    %137 = vmatpush2.msra.mxu0 0.0
    %138 = vmatprep.subr.mxu0 0.0
    %139 = vmatpush2.msra.mxu0 0.0
    %140 = vmatprep.subr.mxu0 0.0
    %141 = vmatpush2.msra.mxu0 0.0
    %142 = vmatprep.subr.mxu0 0.0
    %143 = vmatpush2.msra.mxu0 0.0
    %144 = vmatprep.subr.mxu0 0.0
    %145 = vmatpush2.msra.mxu0 0.0
    %146 = vmatprep.subr.mxu0 0.0
    %147 = vmatpush2.msra.mxu0 0.0
    %148 = vmatprep.subr.mxu0 0.0
    %149 = vmatpush2.msra.mxu0 0.0
    %150 = vmatprep.subr.mxu0 0.0
    %151 = vmatpush2.msra.mxu0 0.0
    %152 = vmatprep.subr.mxu0 0.0
    %153 = vmatpush2.msra.mxu0 0.0
    %154 = vmatprep.subr.mxu0 0.0
    %155 = vmatpush2.msra.mxu0 0.0
    %156 = vmatprep.subr.mxu0 0.0
    %157 = vmatpush2.msra.mxu0 0.0
    %158 = vmatprep.subr.mxu0 0.0
    %159 = vmatpush2.msra.mxu0 0.0
    %160 = vmatprep.subr.mxu0 0.0
    %161 = vmatpush2.msra.mxu0 0.0
    %162 = vmatprep.mubr.f32.mxu0 0.0
    %163 = vmatmul.mubr.f32.gmra.mxu0 %v86
    %v164 = vpop.f32.mrf.mxu0
    %v165 = vadd.f32 %v77, %v164
    %v166 = vpop.f32.mrf.mxu0
    %v167 = vadd.f32 %v81, %v166
    %168 = vmatprep.mubr.f32.mxu0 0.0
    %169 = vmatmul.mubr.f32.gmra.mxu0 %v89
    %v170 = vpop.f32.mrf.mxu0
    %v171 = vadd.f32 %v77, %v170
    %v172 = vpop.f32.mrf.mxu0
    %v173 = vadd.f32 %v81, %v172
    %174 = vdwg.mxu0
    %vm175 = vcmp.gt.f32.partialorder %v165, 0.0
    %vm176 = vcmp.gt.f32.partialorder %v171, 0.0
    %v177 = vmul.f32 %v165, 0.01
    %v178 = vmul.f32 %v171, 0.01
    %v179 = vsel %vm175, %v165, %v177
    %v180 = vsel %vm176, %v171, %v178
    %181 = vst [vmem:[#allocation8] sm:$0xff] %v179
    %182 = vst [vmem:[#allocation8 + $0x8] sm:$0xff] %v180
    %v183 = vld [vmem:[#allocation7] sm:$0xff]
    %v184 = vld [vmem:[#allocation7 + $0x8] sm:$0xff]
    %v185 = vld [vmem:[#allocation7 + $0x10] sm:$0xff]
    %v186 = vld [vmem:[#allocation7 + $0x18] sm:$0xff]
    %v187 = vld [vmem:[#allocation7 + $0x20] sm:$0xff]
    %v188 = vld [vmem:[#allocation7 + $0x28] sm:$0xff]
    %v189 = vld [vmem:[#allocation7 + $0x30] sm:$0xff]
    %v190 = vld [vmem:[#allocation7 + $0x38] sm:$0xff]
    %v191 = vld [vmem:[#allocation7 + $0x40] sm:$0xff]
    %v192 = vld [vmem:[#allocation7 + $0x48] sm:$0xff]
    %v193 = vld [vmem:[#allocation7 + $0x50] sm:$0xff]
    %v194 = vld [vmem:[#allocation7 + $0x58] sm:$0xff]
    %v195 = vld [vmem:[#allocation7 + $0x60] sm:$0xff]
    %v196 = vld [vmem:[#allocation7 + $0x68] sm:$0xff]
    %v197 = vld [vmem:[#allocation7 + $0x70] sm:$0xff]
    %v198 = vld [vmem:[#allocation7 + $0x78] sm:$0xff]
    %199 = vmatprep.subr.mxu0 0.0
    %200 = vmatpush1.msra.mxu0 %v198
    %201 = vmatprep.subr.mxu0 0.0
    %202 = vmatpush1.msra.mxu0 %v197
    %203 = vmatprep.subr.mxu0 0.0
    %204 = vmatpush1.msra.mxu0 %v196
    %205 = vmatprep.subr.mxu0 0.0
    %206 = vmatpush1.msra.mxu0 %v195
    %207 = vmatprep.subr.mxu0 0.0
    %208 = vmatpush1.msra.mxu0 %v194
    %209 = vmatprep.subr.mxu0 0.0
    %210 = vmatpush1.msra.mxu0 %v193
    %211 = vmatprep.subr.mxu0 0.0
    %212 = vmatpush1.msra.mxu0 %v192
    %213 = vmatprep.subr.mxu0 0.0
    %214 = vmatpush1.msra.mxu0 %v191
    %215 = vmatprep.subr.mxu0 0.0
    %216 = vmatpush1.msra.mxu0 %v190
    %217 = vmatprep.subr.mxu0 0.0
    %218 = vmatpush1.msra.mxu0 %v189
    %219 = vmatprep.subr.mxu0 0.0
    %220 = vmatpush1.msra.mxu0 %v188
    %221 = vmatprep.subr.mxu0 0.0
    %222 = vmatpush1.msra.mxu0 %v187
    %223 = vmatprep.subr.mxu0 0.0
    %224 = vmatpush1.msra.mxu0 %v186
    %225 = vmatprep.subr.mxu0 0.0
    %226 = vmatpush1.msra.mxu0 %v185
    %227 = vmatprep.subr.mxu0 0.0
    %228 = vmatpush1.msra.mxu0 %v184
    %229 = vmatprep.subr.mxu0 0.0
    %230 = vmatpush1.msra.mxu0 %v183
    %231 = vmatprep.subr.mxu0 0.0
    %232 = vmatpush2.msra.mxu0 0.0
    %233 = vmatprep.subr.mxu0 0.0
    %234 = vmatpush2.msra.mxu0 0.0
    %235 = vmatprep.subr.mxu0 0.0
    %236 = vmatpush2.msra.mxu0 0.0
    %237 = vmatprep.subr.mxu0 0.0
    %238 = vmatpush2.msra.mxu0 0.0
    %239 = vmatprep.subr.mxu0 0.0
    %240 = vmatpush2.msra.mxu0 0.0
    %241 = vmatprep.subr.mxu0 0.0
    %242 = vmatpush2.msra.mxu0 0.0
    %243 = vmatprep.subr.mxu0 0.0
    %244 = vmatpush2.msra.mxu0 0.0
    %245 = vmatprep.subr.mxu0 0.0
    %246 = vmatpush2.msra.mxu0 0.0
    %247 = vmatprep.subr.mxu0 0.0
    %248 = vmatpush2.msra.mxu0 0.0
    %249 = vmatprep.subr.mxu0 0.0
    %250 = vmatpush2.msra.mxu0 0.0
    %251 = vmatprep.subr.mxu0 0.0
    %252 = vmatpush2.msra.mxu0 0.0
    %253 = vmatprep.subr.mxu0 0.0
    %254 = vmatpush2.msra.mxu0 0.0
    %255 = vmatprep.subr.mxu0 0.0
    %256 = vmatpush2.msra.mxu0 0.0
    %257 = vmatprep.subr.mxu0 0.0
    %258 = vmatpush2.msra.mxu0 0.0
    %259 = vmatprep.subr.mxu0 0.0
    %260 = vmatpush2.msra.mxu0 0.0
    %261 = vmatprep.subr.mxu0 0.0
    %262 = vmatpush2.msra.mxu0 0.0
    %263 = vmatprep.mubr.f32.mxu0 0.0
    %264 = vmatmul.mubr.f32.gmra.mxu0 %v179
    %v265 = vpop.f32.mrf.mxu0
    %v266 = vadd.f32 0.0, %v265
    %v267 = vpop.f32.mrf.mxu0
    %268 = vmatprep.mubr.f32.mxu0 0.0
    %269 = vmatmul.mubr.f32.gmra.mxu0 %v180
    %v270 = vpop.f32.mrf.mxu0
    %v271 = vadd.f32 0.0, %v270
    %v272 = vpop.f32.mrf.mxu0
    %273 = vdwg.mxu0
    %v274 = vadd.f32 %v167, %v266
    %v275 = vadd.f32 %v173, %v271
    %vm276 = vcmp.gt.f32.partialorder %v274, 0.0
    %vm277 = vcmp.gt.f32.partialorder %v275, 0.0
    %v278 = vmul.f32 %v274, 0.01
    %v279 = vmul.f32 %v275, 0.01
    %v280 = vsel %vm276, %v274, %v278
    %v281 = vsel %vm277, %v275, %v279
    %282 = vst [vmem:[#allocation9] sm:$0xff] %v280
    %283 = vst [vmem:[#allocation9 + $0x8] sm:$0xff] %v281
    // Predicated region
    $region30: #{tpu_custom_call.1} parent=1 // pred_check
      _
    $region31: #{tpu_custom_call.1} parent=1 // pred_check_branch
      %285 = sbr.rel (0) target = $region33
    $region32: #{tpu_custom_call.1} parent=1 // pred_region
      %s287 = ssub.s32 256, 256
      %288 = vsyncadd [#allocation4], %s287
      %s289 = sshll.u32 [#allocation8], 4
      %s290 = int_to_ptr.vmem [resolvable:$true] %s289
      %295 = dma.vmem_to_hbm [thread:$0]  %s290, 256, %s4, [#allocation4], 128, 128, 8
    $region33: #{tpu_custom_call.1} parent=1 // pred_fallthru
      _
    // Predicated region
    $region34: #{tpu_custom_call.1} parent=1 // pred_check
      _
    $region35: #{tpu_custom_call.1} parent=1 // pred_check_branch
      %297 = sbr.rel (0) target = $region37
    $region36: #{tpu_custom_call.1} parent=1 // pred_region
      %s299 = ssub.s32 256, 256
      %300 = vsyncadd [#allocation10], %s299
      %s301 = sshll.u32 [#allocation9], 4
      %s302 = int_to_ptr.vmem [resolvable:$true] %s301
      %307 = dma.vmem_to_hbm [thread:$0]  %s302, 256, %s5, [#allocation10], 128, 128, 8
    $region37: #{tpu_custom_call.1} parent=1 // pred_fallthru
      _
    // Predicated region
    $region38: #{tpu_custom_call.1} parent=1 // pred_check
      _
    $region39: #{tpu_custom_call.1} parent=1 // pred_check_branch
      %309 = sbr.rel (0) target = $region41
    $region40: #{tpu_custom_call.1} parent=1 // pred_region
      %310 = dma.done [#allocation4], 256
    $region41: #{tpu_custom_call.1} parent=1 // pred_fallthru
      _
    // Predicated region
    $region42: #{tpu_custom_call.1} parent=1 // pred_check
      _
    $region43: #{tpu_custom_call.1} parent=1 // pred_check_branch
      %312 = sbr.rel (0) target = $region45
    $region44: #{tpu_custom_call.1} parent=1 // pred_region
      %313 = dma.done [#allocation10], 256
    $region45: #{tpu_custom_call.1} parent=1 // pred_fallthru
      _
    %314 = vsyncpa [#allocation3], 1
    %315 = vsyncpa [#allocation6], 1
    %316 = vsyncpa [#allocation4], 1
    %317 = vsyncpa [#allocation10], 1

</llo_original>
